<compile_context>
chip_gen: v7x
topology: tpu7x:2x2x1
jax: 0.10.0
libtpu: 0.0.40
codegen_flags: <defaults>
</compile_context>

<pallas_src>
import functools

import jax
import jax.numpy as jnp
from jax import lax
from jax.experimental import pallas as pl
from jax.experimental.pallas import tpu as pltpu


SCALE = 20.0
NORM_EPS = 1e-12       # torch.nn.functional.normalize clamps the norm to eps
NEG_INF = -1e30        # finite "minus infinity" for padded class columns


def _round_up(x, m):
    return (x + m - 1) // m * m


def _loss_kernel(a_ref, ct_ref, invc_ref, lab_ref, o_ref, *, n_valid, n_pad):
    # a_ref:    [TB, D]     raw (un-normalized) input-sentence embeddings, f32
    # ct_ref:   [D, N_pad]  raw class embeddings, pre-transposed, bf16 (resident)
    # invc_ref: [1, N_pad]  precomputed f32 class inverse norms (resident)
    # lab_ref:  [TB, 1]     int32 labels for this row tile
    # o_ref:    [TB, 1]     per-row cross-entropy loss (independent block per tile)
    a = a_ref[...]                                                     # f32 [TB, D]

    # Row norm in f32 (torch.normalize eps semantics), folded with SCALE into
    # the small [TB, D] operand before the bf16 cast — so only ONE [TB, N_pad]
    # multiply (by inv_c) remains after the matmul.
    inv_a = lax.rsqrt(
        jnp.maximum(jnp.sum(a * a, axis=-1, keepdims=True), NORM_EPS * NORM_EPS))
    a_scaled = (a * (SCALE * inv_a)).astype(jnp.bfloat16)              # [TB, D] bf16

    # Natural-layout bf16 MXU matmul with f32 accumulation.
    raw = jnp.dot(a_scaled, ct_ref[...], preferred_element_type=jnp.float32)  # [TB, N_pad]

    # Column rescale: single broadcast multiply by the hoisted inverse norms.
    scores = raw * invc_ref[...]                                       # [TB, N_pad]

    # Column index grid (also used for the label gather).
    col = lax.broadcasted_iota(jnp.int32, scores.shape, 1)
    if n_valid != n_pad:
        scores = jnp.where(col < n_valid, scores, NEG_INF)             # mask padding

    # CrossEntropyLoss (per row): logsumexp(scores) - scores[label]
    m = jnp.max(scores, axis=-1, keepdims=True)
    lse = jnp.log(jnp.sum(jnp.exp(scores - m), axis=-1, keepdims=True)) + m   # [TB, 1]
    picked = jnp.sum(jnp.where(col == lab_ref[...], scores, 0.0),
                     axis=-1, keepdims=True)                                   # [TB, 1]
    o_ref[...] = lse - picked


def sentence_cross_entropy_loss(emb_inputs, emb_classes, labels, *, block_b=256):
    """emb_inputs: [B, D], emb_classes: [N, D], labels: [B] int -> scalar f32."""
    B, D = emb_inputs.shape
    N, D2 = emb_classes.shape
    assert D == D2

    # Lane/sublane-friendly padding; TB=256 default fills the 256-wide MXU
    # on v6e/v7x (clamped down for small batches).
    N_pad = _round_up(N, 128)
    TB = min(block_b, _round_up(B, 8))
    B_pad = _round_up(B, TB)
    num_tiles = B_pad // TB

    a = jnp.pad(emb_inputs.astype(jnp.float32), ((0, B_pad - B), (0, 0)))

    cls_f32 = emb_classes.astype(jnp.float32)
    # Hoisted class inverse norms, computed once in f32 (padded cols -> 0,
    # they are masked to -inf in-kernel anyway).
    inv_c = lax.rsqrt(
        jnp.maximum(jnp.sum(cls_f32 * cls_f32, axis=-1), NORM_EPS * NORM_EPS))
    inv_c = jnp.pad(inv_c, (0, N_pad - N)).reshape(1, N_pad)
    # Pre-transposed, lane-padded, bf16 class block (layout plumbing in the
    # wrapper; natural MXU layout in the kernel).
    ct = jnp.pad(cls_f32, ((0, N_pad - N), (0, 0))).T.astype(jnp.bfloat16)

    lab = jnp.pad(labels.astype(jnp.int32), (0, B_pad - B)).reshape(B_pad, 1)

    kernel = functools.partial(_loss_kernel, n_valid=N, n_pad=N_pad)

    # VMEM sizing: double-buffered per-tile buffers + resident bf16 class block
    # (+ headroom), capped at 64 MiB so it stays within v7x's physical VMEM.
    # NOTE: pipeline_mode=pl.Buffered(1) on the resident class block would
    # drop its second buffer; omitted here for lowering-compat safety.
    est = (2 * D * N_pad * 2          # class block (bf16), double-buffered
           + 2 * TB * D * 4           # input tile (f32), double-buffered
           + 2 * N_pad * 4            # inv_c (f32)
           + 2 * TB * 4 + 2 * TB * 4  # labels + per-row output
           + (1 << 20))               # slack
    vmem_limit = int(min(max(2 * est, 32 << 20), 64 << 20))

    per_row = pl.pallas_call(
        kernel,
        out_shape=jax.ShapeDtypeStruct((B_pad, 1), jnp.float32),
        grid_spec=pltpu.PrefetchScalarGridSpec(
            num_scalar_prefetch=0,
            grid=(num_tiles,),
            in_specs=[
                pl.BlockSpec((TB, D), lambda i: (i, 0)),        # input rows (tiled over B)
                pl.BlockSpec((D, N_pad), lambda i: (0, 0)),     # classes, bf16 (resident)
                pl.BlockSpec((1, N_pad), lambda i: (0, 0)),     # class inv-norms (resident)
                pl.BlockSpec((TB, 1), lambda i: (i, 0)),        # labels (tiny, tiled over B)
            ],
            out_specs=pl.BlockSpec((TB, 1), lambda i: (i, 0)),  # independent per-tile blocks
        ),
        compiler_params=pltpu.CompilerParams(
            dimension_semantics=("parallel",),                  # shards B tiles across TCs
            vmem_limit_bytes=vmem_limit),
    )(a, ct, inv_c, lab)

    # Tiny wrapper-side reduction: mean over the valid batch rows.
    return jnp.sum(per_row[:B, 0]) * (1.0 / B)


# ---------------------------------------------------------------------------
# Synthetic deterministic "sentence transformer" (plain-JAX glue).
# ---------------------------------------------------------------------------
def make_encoder_params(key, vocab=32, hidden=128):
    k1, k2 = jax.random.split(key)
    emb_table = jax.random.normal(k1, (vocab, hidden), dtype=jnp.float32) * 0.1
    proj = jax.random.normal(k2, (hidden, hidden), dtype=jnp.float32) * 0.05
    return {"emb": emb_table, "proj": proj}


def encode(params, input_ids):
    # input_ids: [rows, seq] int32 -> sentence embeddings [rows, hidden]
    tok = params["emb"][input_ids]            # [rows, seq, hidden]
    pooled = jnp.mean(tok, axis=1)            # mean pooling
    return pooled @ params["proj"]            # [rows, hidden]


def reference_loss(emb_inputs, emb_classes, labels):
    a = emb_inputs / jnp.maximum(
        jnp.linalg.norm(emb_inputs, axis=-1, keepdims=True), NORM_EPS)
    c = emb_classes / jnp.maximum(
        jnp.linalg.norm(emb_classes, axis=-1, keepdims=True), NORM_EPS)
    scores = (a @ c.T) * SCALE
    logp = jax.nn.log_softmax(scores, axis=-1)
    nll = -jnp.take_along_axis(logp, labels[:, None], axis=-1)[:, 0]
    return jnp.mean(nll)


if __name__ == "__main__":
    key = jax.random.PRNGKey(0)
    k_params, k_in, k_cls, k_lbl = jax.random.split(key, 4)

    B, S, N, D, V = 8, 8, 16, 128, 32
    params = make_encoder_params(k_params, vocab=V, hidden=D)

    # sentence_features[0] and classes: dicts of token ids
    input_ids = jax.random.randint(k_in, (B, S), 0, V, dtype=jnp.int32)
    class_ids = jax.random.randint(k_cls, (N, S), 0, V, dtype=jnp.int32)
    labels = jax.random.randint(k_lbl, (B,), 0, N, dtype=jnp.int32)

    emb_inputs = encode(params, input_ids)    # [B, D]
    emb_classes = encode(params, class_ids)   # [N, D]

    loss = sentence_cross_entropy_loss(emb_inputs, emb_classes, labels)
    loss = jax.block_until_ready(loss)

    ref = reference_loss(emb_inputs, emb_classes, labels)
    # bf16 MXU operands (f32 norms / f32 accumulation): allow small rounding slack.
    assert jnp.abs(loss - ref) < 5e-2, (loss, ref)

    print("KERNEL_OK")
</pallas_src>

<mosaic_0001>
module attributes {stable_mosaic.version = 11 : i64} {
  func.func @_loss_kernel(%arg0: i32, %arg1: memref<8x128xf32, #tpu.memory_space<vmem>>, %arg2: memref<128x128xbf16, #tpu.memory_space<vmem>>, %arg3: memref<1x128xf32, #tpu.memory_space<vmem>>, %arg4: memref<8x1xi32, #tpu.memory_space<vmem>>, %arg5: memref<8x1xf32, #tpu.memory_space<vmem>>) attributes {dimension_semantics = [#tpu.dimension_semantics<parallel>], iteration_bounds = array<i64: 1>, scalar_prefetch = 0 : i64, scratch_operands = 0 : i64, tpu.core_type = #tpu.core_type<tc>, window_params = [{transform_indices = @transform_0, window_bounds = array<i64: 8, 128>}, {pipeline_mode = #tpu.pipeline_mode<synchronous>, transform_indices = @transform_1, window_bounds = array<i64: 128, 128>}, {pipeline_mode = #tpu.pipeline_mode<synchronous>, transform_indices = @transform_2, window_bounds = array<i64: 1, 128>}, {transform_indices = @transform_3, window_bounds = array<i64: 8, 1>}, {transform_indices = @transform_4, window_bounds = array<i64: 8, 1>}]} {
    %c0 = arith.constant 0 : index
    %c0_0 = arith.constant 0 : index
    %0 = vector.load %arg1[%c0, %c0_0] : memref<8x128xf32, #tpu.memory_space<vmem>>, vector<8x128xf32>
    %1 = arith.mulf %0, %0 : vector<8x128xf32>
    %cst = arith.constant dense<0.000000e+00> : vector<8xf32>
    %2 = vector.multi_reduction <add>, %1, %cst [1] : vector<8x128xf32> to vector<8xf32>
    %3 = vector.shape_cast %2 : vector<8xf32> to vector<8x1xf32>
    %cst_1 = arith.constant 1.000000e-24 : f32
    %4 = vector.broadcast %cst_1 : f32 to vector<8x1xf32>
    %5 = arith.maximumf %3, %4 : vector<8x1xf32>
    %6 = math.rsqrt %5 : vector<8x1xf32>
    %cst_2 = arith.constant 2.000000e+01 : f32
    %7 = vector.broadcast %cst_2 : f32 to vector<8x1xf32>
    %8 = arith.mulf %7, %6 : vector<8x1xf32>
    %9 = vector.broadcast %8 : vector<8x1xf32> to vector<8x128xf32>
    %10 = arith.mulf %0, %9 : vector<8x128xf32>
    %11 = arith.truncf %10 : vector<8x128xf32> to vector<8x128xbf16>
    %c0_3 = arith.constant 0 : index
    %c0_4 = arith.constant 0 : index
    %12 = vector.load %arg2[%c0_3, %c0_4] : memref<128x128xbf16, #tpu.memory_space<vmem>>, vector<128x128xbf16>
    %cst_5 = arith.constant dense<0.000000e+00> : vector<8x128xf32>
    %13 = tpu.matmul %11, %12, %cst_5 {dimension_numbers = #tpu.dot_dimension_numbers<[1], [0], [0], [1], [0, 0, 1, 1], [], []>} : vector<8x128xbf16>, vector<128x128xbf16>, vector<8x128xf32> -> vector<8x128xf32>
    %c0_6 = arith.constant 0 : index
    %c0_7 = arith.constant 0 : index
    %14 = vector.load %arg3[%c0_6, %c0_7] : memref<1x128xf32, #tpu.memory_space<vmem>>, vector<1x128xf32>
    %15 = vector.broadcast %14 : vector<1x128xf32> to vector<8x128xf32>
    %16 = arith.mulf %13, %15 : vector<8x128xf32>
    %17 = tpu.iota {dimensions = array<i32: 1>} : vector<8x128xi32>
    %c16_i32 = arith.constant 16 : i32
    %18 = vector.broadcast %c16_i32 : i32 to vector<8x128xi32>
    %19 = arith.cmpi slt, %17, %18 : vector<8x128xi32>
    %cst_8 = arith.constant -1.000000e+30 : f32
    %20 = vector.broadcast %cst_8 : f32 to vector<8x128xf32>
    %21 = arith.select %19, %16, %20 : vector<8x128xi1>, vector<8x128xf32>
    %cst_9 = arith.constant dense<0xFF800000> : vector<8xf32>
    %22 = vector.multi_reduction <maximumf>, %21, %cst_9 [1] : vector<8x128xf32> to vector<8xf32>
    %23 = vector.shape_cast %22 : vector<8xf32> to vector<8x1xf32>
    %24 = vector.broadcast %23 : vector<8x1xf32> to vector<8x128xf32>
    %25 = arith.subf %21, %24 : vector<8x128xf32>
    %26 = math.exp %25 : vector<8x128xf32>
    %cst_10 = arith.constant dense<0.000000e+00> : vector<8xf32>
    %27 = vector.multi_reduction <add>, %26, %cst_10 [1] : vector<8x128xf32> to vector<8xf32>
    %28 = vector.shape_cast %27 : vector<8xf32> to vector<8x1xf32>
    %29 = math.log %28 : vector<8x1xf32>
    %30 = arith.addf %29, %23 : vector<8x1xf32>
    %c0_11 = arith.constant 0 : index
    %c0_12 = arith.constant 0 : index
    %31 = vector.load %arg4[%c0_11, %c0_12] : memref<8x1xi32, #tpu.memory_space<vmem>>, vector<8x1xi32>
    %32 = vector.broadcast %31 : vector<8x1xi32> to vector<8x128xi32>
    %33 = arith.cmpi eq, %17, %32 : vector<8x128xi32>
    %cst_13 = arith.constant 0.000000e+00 : f32
    %34 = vector.broadcast %cst_13 : f32 to vector<8x128xf32>
    %35 = arith.select %33, %21, %34 : vector<8x128xi1>, vector<8x128xf32>
    %cst_14 = arith.constant dense<0.000000e+00> : vector<8xf32>
    %36 = vector.multi_reduction <add>, %35, %cst_14 [1] : vector<8x128xf32> to vector<8xf32>
    %37 = vector.shape_cast %36 : vector<8xf32> to vector<8x1xf32>
    %38 = arith.subf %30, %37 : vector<8x1xf32>
    %c0_15 = arith.constant 0 : index
    %c0_16 = arith.constant 0 : index
    %39 = vector.load %arg5[%c0_15, %c0_16] : memref<8x1xf32, #tpu.memory_space<vmem>>, vector<8x1xf32>
    tpu.vector_store %arg5[%c0_15, %c0_16], %38 {strides = array<i32>} : memref<8x1xf32, #tpu.memory_space<vmem>>, vector<8x1xf32>,
    return
  }
  func.func @transform_0(%arg0: i32) -> (i32, i32) {
    %c0_i32 = arith.constant 0 : i32
    %c0_i32_0 = arith.constant 0 : i32
    return %arg0, %c0_i32 : i32, i32
  }
  func.func @transform_1(%arg0: i32) -> (i32, i32) {
    %c0_i32 = arith.constant 0 : i32
    %c0_i32_0 = arith.constant 0 : i32
    %c0_i32_1 = arith.constant 0 : i32
    return %c0_i32, %c0_i32_0 : i32, i32
  }
  func.func @transform_2(%arg0: i32) -> (i32, i32) {
    %c0_i32 = arith.constant 0 : i32
    %c0_i32_0 = arith.constant 0 : i32
    %c0_i32_1 = arith.constant 0 : i32
    return %c0_i32, %c0_i32_0 : i32, i32
  }
  func.func @transform_3(%arg0: i32) -> (i32, i32) {
    %c0_i32 = arith.constant 0 : i32
    %c0_i32_0 = arith.constant 0 : i32
    return %arg0, %c0_i32 : i32, i32
  }
  func.func @transform_4(%arg0: i32) -> (i32, i32) {
    %c0_i32 = arith.constant 0 : i32
    %c0_i32_0 = arith.constant 0 : i32
    return %arg0, %c0_i32 : i32, i32
  }
}

</mosaic_0001>

<llo_original>
// kernel: tpu_custom_call.1
$region0: #{tpu_custom_call.1}
  #allocation0 [shape = 'u32[]', space=smem, size = 0x4, offset = 0x4, fixed_abs, tag = 'smem constant byte address 0x4 - core index']
  #allocation1 [shape = 'u32[144,128]{1,0:T(1,128)}', space=vmem, size = 0x12000, scoped, tag = 'internal scratch']
  %s0 = inlined_call_operand.vmem [shape: f32[8,128], index: 0, kind: input, shape index: {}]
  %s1 = inlined_call_operand.hbm [shape: bf16[128,128], index: 1, kind: input, shape index: {}]
  %s2 = inlined_call_operand.vmem [shape: f32[1,128], index: 2, kind: input, shape index: {}]
  %s3 = inlined_call_operand.vmem [shape: s32[8,1], index: 3, kind: input, shape index: {}]
  %s4 = inlined_call_operand.vmem [shape: f32[8,1], index: 4, kind: output, shape index: {}]
  %s5 = sld [smem:[#allocation0]]
  $region30: #{tpu_custom_call.1} parent=0
    _
  %s7 = ssub.s32 1, %s5
  %s8 = scalar_select 0, %s7, %s5
  $region1: #{tpu_custom_call.1} parent=0
    #allocation2 [shape = 'u8[32768]{0}', space=vmem, size = 0x8000, scoped, tag = 'input window, operand 1, single buffered']
    #allocation3 [shape = 's32[1]{0}', space=sflag, size = 0x4, scoped, tag = 'scoped memory for tpu_custom_call.1']
    %9 = vsyncpa [#allocation3], 0
    // Predicated region
    $region2: #{tpu_custom_call.1} parent=1 // pred_check
      _
    $region3: #{tpu_custom_call.1} parent=1 // pred_check_branch
      %11 = sbr.rel (0) target = $region5
    $region4: #{tpu_custom_call.1} parent=1 // pred_region
      _
    $region5: #{tpu_custom_call.1} parent=1 // pred_fallthru
      _
    // Predicated region
    $region6: #{tpu_custom_call.1} parent=1 // pred_check
      _
    $region7: #{tpu_custom_call.1} parent=1 // pred_check_branch
      %13 = sbr.rel (0) target = $region9
    $region8: #{tpu_custom_call.1} parent=1 // pred_region
      %s15 = ssub.s32 1024, 1024
      %16 = vsyncadd [#allocation3], %s15
      %s17 = sshll.u32 [#allocation2], 4
      %s18 = int_to_ptr.vmem [resolvable:$true] %s17
      %23 = dma.hbm_to_vmem [thread:$0]  %s1, 1024, %s18, [#allocation3], 64, 64, 4
    $region9: #{tpu_custom_call.1} parent=1 // pred_fallthru
      _
    // Predicated region
    $region10: #{tpu_custom_call.1} parent=1 // pred_check
      _
    $region11: #{tpu_custom_call.1} parent=1 // pred_check_branch
      %25 = sbr.rel (0) target = $region13
    $region12: #{tpu_custom_call.1} parent=1 // pred_region
      _
    $region13: #{tpu_custom_call.1} parent=1 // pred_fallthru
      _
    // Predicated region
    $region14: #{tpu_custom_call.1} parent=1 // pred_check
      _
    $region15: #{tpu_custom_call.1} parent=1 // pred_check_branch
      %27 = sbr.rel (0) target = $region17
    $region16: #{tpu_custom_call.1} parent=1 // pred_region
      _
    $region17: #{tpu_custom_call.1} parent=1 // pred_fallthru
      _
    // Predicated region
    $region18: #{tpu_custom_call.1} parent=1 // pred_check
      _
    $region19: #{tpu_custom_call.1} parent=1 // pred_check_branch
      %29 = sbr.rel (0) target = $region21
    $region20: #{tpu_custom_call.1} parent=1 // pred_region
      %30 = dma.done [#allocation3], 1024
    $region21: #{tpu_custom_call.1} parent=1 // pred_fallthru
      _
    %v32 = vld [vmem:[%s0] sm:$0xff]
    %v33 = vmul.f32 %v32, %v32
    %34 = vadd.xlane.f32.xlu0 %v33
    %v35 = vpop.xlane.xlu0 %34
    %v36 = vmax.f32 %v35, 1e-24
    %v37 = vrsqrt.pop %v36
    %v38 = vmul.f32 %v37, 20.0
    %v39 = vmul.f32 %v32, %v38
    %v40 = vpack.c.bf16 %v39, %v39
    %v41 = vld [vmem:[#allocation2] sm:$0xf]
    %v42 = vld [vmem:[#allocation2 + $0x4] sm:$0xf]
    %v43 = vld [vmem:[#allocation2 + $0x8] sm:$0xf]
    %v44 = vld [vmem:[#allocation2 + $0xc] sm:$0xf]
    %v45 = vld [vmem:[#allocation2 + $0x10] sm:$0xf]
    %v46 = vld [vmem:[#allocation2 + $0x14] sm:$0xf]
    %v47 = vld [vmem:[#allocation2 + $0x18] sm:$0xf]
    %v48 = vld [vmem:[#allocation2 + $0x1c] sm:$0xf]
    %v49 = vld [vmem:[#allocation2 + $0x20] sm:$0xf]
    %v50 = vld [vmem:[#allocation2 + $0x24] sm:$0xf]
    %v51 = vld [vmem:[#allocation2 + $0x28] sm:$0xf]
    %v52 = vld [vmem:[#allocation2 + $0x2c] sm:$0xf]
    %v53 = vld [vmem:[#allocation2 + $0x30] sm:$0xf]
    %v54 = vld [vmem:[#allocation2 + $0x34] sm:$0xf]
    %v55 = vld [vmem:[#allocation2 + $0x38] sm:$0xf]
    %v56 = vld [vmem:[#allocation2 + $0x3c] sm:$0xf]
    %v73 = vunpack.c.l.b16 %v41
    %v74 = vunpack.c.l.b16 %v42
    %v75 = vunpack.c.l.b16 %v43
    %v76 = vunpack.c.l.b16 %v44
    %v77 = vunpack.c.l.b16 %v45
    %v78 = vunpack.c.l.b16 %v46
    %v79 = vunpack.c.l.b16 %v47
    %v80 = vunpack.c.l.b16 %v48
    %v81 = vunpack.c.l.b16 %v49
    %v82 = vunpack.c.l.b16 %v50
    %v83 = vunpack.c.l.b16 %v51
    %v84 = vunpack.c.l.b16 %v52
    %v85 = vunpack.c.l.b16 %v53
    %v86 = vunpack.c.l.b16 %v54
    %v87 = vunpack.c.l.b16 %v55
    %v88 = vunpack.c.l.b16 %v56
    %v89 = vpack.c.b16 %v74, %v73
    %v90 = vpack.c.b16 %v76, %v75
    %v91 = vpack.c.b16 %v78, %v77
    %v92 = vpack.c.b16 %v80, %v79
    %v93 = vpack.c.b16 %v82, %v81
    %v94 = vpack.c.b16 %v84, %v83
    %v95 = vpack.c.b16 %v86, %v85
    %v96 = vpack.c.b16 %v88, %v87
    %105 = vmatprep.subr.bf16.mxu0 0
    %106 = vmatpush1.bf16.msra.mxu0 %v89
    %107 = vmatprep.subr.bf16.mxu0 0
    %108 = vmatpush1.bf16.msra.mxu0 %v90
    %109 = vmatprep.subr.bf16.mxu0 0
    %110 = vmatpush1.bf16.msra.mxu0 %v91
    %111 = vmatprep.subr.bf16.mxu0 0
    %112 = vmatpush1.bf16.msra.mxu0 %v92
    %113 = vmatprep.subr.bf16.mxu0 0
    %114 = vmatpush1.bf16.msra.mxu0 %v93
    %115 = vmatprep.subr.bf16.mxu0 0
    %116 = vmatpush1.bf16.msra.mxu0 %v94
    %117 = vmatprep.subr.bf16.mxu0 0
    %118 = vmatpush1.bf16.msra.mxu0 %v95
    %119 = vmatprep.subr.bf16.mxu0 0
    %120 = vmatpush1.bf16.msra.mxu0 %v96
    %121 = vmatprep.subr.bf16.mxu0 0
    %122 = vmatpush1.bf16.msra.mxu0 0
    %123 = vmatprep.subr.bf16.mxu0 0
    %124 = vmatpush1.bf16.msra.mxu0 0
    %125 = vmatprep.subr.bf16.mxu0 0
    %126 = vmatpush1.bf16.msra.mxu0 0
    %127 = vmatprep.subr.bf16.mxu0 0
    %128 = vmatpush1.bf16.msra.mxu0 0
    %129 = vmatprep.subr.bf16.mxu0 0
    %130 = vmatpush1.bf16.msra.mxu0 0
    %131 = vmatprep.subr.bf16.mxu0 0
    %132 = vmatpush1.bf16.msra.mxu0 0
    %133 = vmatprep.subr.bf16.mxu0 0
    %134 = vmatpush1.bf16.msra.mxu0 0
    %135 = vmatprep.subr.bf16.mxu0 0
    %136 = vmatpush1.bf16.msra.mxu0 0
    %137 = vmatprep.mubr.bf16.mxu0 0
    %138 = vmatmul.mubr.bf16.gmra.mrb[0].mxu0 %v40
    %v139 = vpop.f32.mrb[0].mxu0
    %v140 = vadd.f32 0.0, %v139
    %v141 = vpop.f32.mrb[0].mxu0
    %v142 = vpop.f32.mrb[0].mxu0
    %v143 = vpop.f32.mrb[0].mxu0
    %144 = vdwg.mxu0
    %v145 = vld [vmem:[%s2] sm:$0x1]
    %v147 = vlaneseq
    %v148 = vshrl.u32 %v147, 7
    %v149 = vsub.s32 0, %v148
    %v150 = vrot.slane %v145, %v149
    %v152 = vmul.f32 %v140, %v150
    %v153 = vlaneseq
    %v154 = vand.u32 %v153, 127
    %vm155 = vcmp.lt.s32.totalorder %v154, 16
    %v156 = vsel %vm155, %v152, -1e+30
    %157 = vmax.xlane.f32.xlu0 %v156
    %v158 = vpop.xlane.xlu0 %157
    %v159 = vsub.f32 %v156, %v158
    %v160 = vmul.f32 %v159, 1.442695
    %v161 = vpow.pop %v160
    %162 = vadd.xlane.f32.xlu0 %v161
    %v163 = vpop.xlane.xlu0 %162
    %v164 = vlog2.pop %v163
    %v165 = vmul.f32 %v164, 0.6931472
    %v166 = vadd.f32 %v165, %v158
    %v167 = vld [vmem:[%s3] sm:$0xff]
    %168 = vset.pattern.permute.xlu0 0
    %169 = vperm.xlu0 %168, %v167
    %v170 = vpop.permute.xlu0 %169
    %vm171 = vcmp.eq.s32.totalorder %v154, %v170
    %v172 = vsel %vm171, %v156, 0.0
    %173 = vadd.xlane.f32.xlu0 %v172
    %v174 = vpop.xlane.xlu0 %173
    %v175 = vsub.f32 %v166, %v174
    %vm176 = vcmask 7168
    %177 = vst.msk [vmem:[%s4] sm:$0xff] %vm176, %v175
    // Predicated region
    $region22: #{tpu_custom_call.1} parent=1 // pred_check
      _
    $region23: #{tpu_custom_call.1} parent=1 // pred_check_branch
      %179 = sbr.rel (0) target = $region25
    $region24: #{tpu_custom_call.1} parent=1 // pred_region
      _
    $region25: #{tpu_custom_call.1} parent=1 // pred_fallthru
      _
    // Predicated region
    $region26: #{tpu_custom_call.1} parent=1 // pred_check
      _
    $region27: #{tpu_custom_call.1} parent=1 // pred_check_branch
      %181 = sbr.rel (0) target = $region29
    $region28: #{tpu_custom_call.1} parent=1 // pred_region
      _
    $region29: #{tpu_custom_call.1} parent=1 // pred_fallthru
      _
    %182 = vsyncpa [#allocation3], 1

</llo_original>
